<compile_context>
chip_gen: v7x
topology: tpu7x:2x2x1
jax: 0.10.0
libtpu: 0.0.40
codegen_flags: <defaults>
</compile_context>

<pallas_src>
import functools

import jax
import jax.numpy as jnp
from jax import lax
from jax.experimental import pallas as pl
from jax.experimental.pallas import tpu as pltpu


# ---------------------------------------------------------------------------
# VMEM budgets (generation aware)
# ---------------------------------------------------------------------------
def _vmem_limits():
    try:
        cap = int(pltpu.get_tpu_info().vmem_capacity_bytes)
    except Exception:
        cap = 64 << 20                      # conservative: v7x physical VMEM
    # v5e/v6e (128 MiB physical) -> 64 MiB scoped; v7x (64 MiB) -> 32 MiB.
    vmem_limit = min(max(cap // 2, 32 << 20), 96 << 20)
    return cap, vmem_limit


def _pick_l_tile(L, bytes_per_lane, budget_bytes):
    """Largest L-tile whose pipelined footprint (bytes_per_lane already
    includes the multi-buffer factor) stays inside budget_bytes.  Returns
    either the full L or a multiple of 128 (lane-dense stores)."""
    if L * bytes_per_lane <= budget_bytes:
        return L
    tiles = budget_bytes // (bytes_per_lane * 128)
    # Clamp to one 128-lane tile minimum; at extreme C this can still exceed
    # the budget -- a C-tiled variant would be needed there (not implemented).
    tl = max(1, tiles) * 128
    return min(tl, L)


# ---------------------------------------------------------------------------
# Fused path: squeeze + excite + scale in one pass, grid=(B,)
# ---------------------------------------------------------------------------
def _fused_kernel(x_ref, w1_ref, w2_ref, out_ref, *, inv_l):
    x = x_ref[...]                                           # (1, C, L)
    xf = x.astype(jnp.float32)
    y = jnp.sum(xf, axis=-1) * inv_l                         # mean over L -> (1, C)
    h = jnp.dot(y, w1_ref[...], preferred_element_type=jnp.float32)
    h = jnp.maximum(h, 0.0)
    z = jnp.dot(h, w2_ref[...], preferred_element_type=jnp.float32)
    s = jax.nn.sigmoid(z)                                    # (1, C)
    out_ref[...] = (xf * s[:, :, None]).astype(out_ref.dtype)


def _fused(x, w1_t, w2_t, *, vmem_limit):
    B, C, L = x.shape
    H = w1_t.shape[1]
    elem = jnp.dtype(x.dtype).itemsize
    cost = pl.CostEstimate(
        flops=2 * B * C * L + 4 * B * C * H,
        transcendentals=B * C,
        bytes_accessed=2 * B * C * L * elem + 2 * C * H * 4)
    kernel = functools.partial(_fused_kernel, inv_l=1.0 / float(L))
    return pl.pallas_call(
        kernel,
        out_shape=jax.ShapeDtypeStruct((B, C, L), x.dtype),
        grid_spec=pltpu.PrefetchScalarGridSpec(
            num_scalar_prefetch=0,
            grid=(B,),
            in_specs=[
                pl.BlockSpec((1, C, L), lambda b: (b, 0, 0)),
                pl.BlockSpec((C, H), lambda b: (0, 0)),
                pl.BlockSpec((H, C), lambda b: (0, 0)),
            ],
            out_specs=pl.BlockSpec((1, C, L), lambda b: (b, 0, 0)),
        ),
        compiler_params=pltpu.CompilerParams(
            dimension_semantics=("parallel",),
            vmem_limit_bytes=vmem_limit),
        cost_estimate=cost,
    )(x, w1_t, w2_t)


# ---------------------------------------------------------------------------
# Fallback pass 1: squeeze (mean over L, accumulated across L-tiles) + excite
# ---------------------------------------------------------------------------
def _squeeze_excite_kernel(x_ref, w1_ref, w2_ref, s_ref, acc_ref,
                           *, l_total, tile_l, needs_mask):
    li = pl.program_id(1)
    n_l = pl.num_programs(1)

    @pl.when(li == 0)
    def _():
        acc_ref[...] = jnp.zeros_like(acc_ref)

    if needs_mask:
        # Hot path: full tiles accumulate unmasked (no per-step VPU filler).
        @pl.when(li < n_l - 1)
        def _():
            acc_ref[...] += jnp.sum(x_ref[...].astype(jnp.float32), axis=-1)

        # Only the ragged final tile pays for the mask, keeping the mean exact.
        @pl.when(li == n_l - 1)
        def _():
            x = x_ref[...].astype(jnp.float32)
            lane = lax.broadcasted_iota(jnp.int32, x.shape, 2) + li * tile_l
            acc_ref[...] += jnp.sum(jnp.where(lane < l_total, x, 0.0), axis=-1)
    else:
        acc_ref[...] += jnp.sum(x_ref[...].astype(jnp.float32), axis=-1)

    @pl.when(li == n_l - 1)
    def _():
        y = acc_ref[...] * (1.0 / float(l_total))            # mean over L, (1, C)
        h = jnp.dot(y, w1_ref[...], preferred_element_type=jnp.float32)
        h = jnp.maximum(h, 0.0)
        z = jnp.dot(h, w2_ref[...], preferred_element_type=jnp.float32)
        # Emit the gate as (1, C, 1): C on sublanes so pass 2 broadcasts along
        # lanes with no lane->sublane relayout.
        s_ref[...] = jax.nn.sigmoid(z)[:, :, None]


def _squeeze_excite(x, w1_t, w2_t, *, tile_l, vmem_limit):
    B, C, L = x.shape
    H = w1_t.shape[1]
    elem = jnp.dtype(x.dtype).itemsize
    n_l = pl.cdiv(L, tile_l)
    kernel = functools.partial(
        _squeeze_excite_kernel,
        l_total=L, tile_l=tile_l, needs_mask=(L % tile_l) != 0)
    cost = pl.CostEstimate(
        flops=B * C * L + 4 * B * C * H,
        transcendentals=B * C,
        bytes_accessed=B * C * L * elem + 2 * C * H * 4 + B * C * 4)
    return pl.pallas_call(
        kernel,
        out_shape=jax.ShapeDtypeStruct((B, C, 1), jnp.float32),
        grid_spec=pltpu.PrefetchScalarGridSpec(
            num_scalar_prefetch=0,
            grid=(B, n_l),
            in_specs=[
                pl.BlockSpec((1, C, tile_l), lambda b, l: (b, 0, l)),
                pl.BlockSpec((C, H), lambda b, l: (0, 0)),
                pl.BlockSpec((H, C), lambda b, l: (0, 0)),
            ],
            # Constant in l -> gate stays resident across the reduction axis.
            out_specs=pl.BlockSpec((1, C, 1), lambda b, l: (b, 0, 0)),
            scratch_shapes=[pltpu.VMEM((1, C), jnp.float32)],
        ),
        # B parallel (2-TC sharding on v7x); L is the reduction -> arbitrary.
        compiler_params=pltpu.CompilerParams(
            dimension_semantics=("parallel", "arbitrary"),
            vmem_limit_bytes=vmem_limit),
        cost_estimate=cost,
    )(x, w1_t, w2_t)


# ---------------------------------------------------------------------------
# Fallback pass 2: scale x by the per-(B, C) gate, tiled over (B, L)
# ---------------------------------------------------------------------------
def _scale_kernel(x_ref, s_ref, out_ref):
    # x_ref: (1, C, TL); s_ref: (1, C, 1) -> lane broadcast, no relayout,
    # no in-kernel dynamic slice.
    out_ref[...] = (x_ref[...].astype(jnp.float32) * s_ref[...]).astype(out_ref.dtype)


def _scale(x, s, *, tile_l, vmem_limit, donate_x=False):
    B, C, L = x.shape
    elem = jnp.dtype(x.dtype).itemsize
    n_l = pl.cdiv(L, tile_l)
    cost = pl.CostEstimate(
        flops=B * C * L,
        transcendentals=0,
        bytes_accessed=2 * B * C * L * elem + B * C * 4)
    kwargs = {}
    if donate_x:
        # Caller donates x -> output reuses x's HBM allocation (footprint win).
        kwargs["input_output_aliases"] = {0: 0}
    return pl.pallas_call(
        _scale_kernel,
        out_shape=jax.ShapeDtypeStruct((B, C, L), x.dtype),
        grid_spec=pltpu.PrefetchScalarGridSpec(
            num_scalar_prefetch=0,
            grid=(B, n_l),
            in_specs=[
                pl.BlockSpec((1, C, tile_l), lambda b, l: (b, 0, l)),
                pl.BlockSpec((1, C, 1), lambda b, l: (b, 0, 0)),
            ],
            out_specs=pl.BlockSpec((1, C, tile_l), lambda b, l: (b, 0, l)),
        ),
        compiler_params=pltpu.CompilerParams(
            dimension_semantics=("parallel", "parallel"),
            vmem_limit_bytes=vmem_limit),
        cost_estimate=cost,
        **kwargs,
    )(x, s)


# ---------------------------------------------------------------------------
# Wrapper
# ---------------------------------------------------------------------------
def se_block(x, w1_t, w2_t, *, force_two_pass=False, max_tile_l=None,
             donate_x=False):
    """x: (B, C, L); w1_t: (C, H); w2_t: (H, C). Returns (B, C, L)."""
    B, C, L = x.shape
    elem = jnp.dtype(x.dtype).itemsize
    _, vmem_limit = _vmem_limits()
    slack = 4 << 20                            # weights, gate, compiler scratch

    # Fused single-pass whenever the double-buffered per-batch slab fits:
    # 2x in blocks + 2x out blocks = 4 * C * L * itemsize.
    fused_bytes = 4 * C * L * elem
    if not force_two_pass and fused_bytes + slack <= vmem_limit:
        return _fused(x, w1_t, w2_t, vmem_limit=vmem_limit)

    # Two-pass fallback for large (C, L) slabs.  Budgets account for ALL
    # pipelined buffers: pass 1 has 2x input blocks; pass 2 has 2x in + 2x out.
    budget = max(vmem_limit - slack, 8 << 20)
    tile_l_reduce = _pick_l_tile(L, 2 * C * elem, budget)
    tile_l_scale = _pick_l_tile(L, 4 * C * elem, budget)
    if max_tile_l is not None:                 # testing hook
        tile_l_reduce = min(tile_l_reduce, max_tile_l)
        tile_l_scale = min(tile_l_scale, max_tile_l)

    s = _squeeze_excite(x, w1_t, w2_t,
                        tile_l=tile_l_reduce, vmem_limit=vmem_limit)
    return _scale(x, s, tile_l=tile_l_scale, vmem_limit=vmem_limit,
                  donate_x=donate_x)


def se_block_ref(x, w1_t, w2_t):
    """Pure-JAX reference mirroring the PyTorch forward."""
    y = jnp.mean(x, axis=-1)                   # AdaptiveAvgPool1d(1) -> (B, C)
    h = jnp.maximum(y @ w1_t, 0.0)             # Linear(C, C//r, bias=False)+ReLU
    s = jax.nn.sigmoid(h @ w2_t)               # Linear(C//r, C, bias=False)+Sigmoid
    return x * s[:, :, None]


if __name__ == "__main__":
    # Small shapes consistent with the module: channel=64, reduction=16 -> H=4.
    B, C, L = 2, 64, 16
    reduction = 16
    H = C // reduction

    key = jax.random.PRNGKey(0)
    kx, k1, k2, kx2 = jax.random.split(key, 4)

    x = jax.random.normal(kx, (B, C, L), dtype=jnp.float32)
    # PyTorch Linear stores (out, in); keep weights pre-transposed to (in, out)
    # so the kernels use plain row-major dots.
    w1_t = jax.random.normal(k1, (C, H), dtype=jnp.float32) * (1.0 / C ** 0.5)
    w2_t = jax.random.normal(k2, (H, C), dtype=jnp.float32) * (1.0 / H ** 0.5)

    # Fused single-pass path (the common case at these shapes).
    out = jax.block_until_ready(se_block(x, w1_t, w2_t))
    ref = se_block_ref(x, w1_t, w2_t)
    assert out.shape == (B, C, L)
    assert jnp.allclose(out, ref, atol=1e-5, rtol=1e-5), "fused path mismatch"

    # Two-pass fallback path, exercised at a small shape with a forced 128-lane
    # tile so the ragged-last-tile mask branch and partial output block run.
    L2 = 160
    x2 = jax.random.normal(kx2, (B, C, L2), dtype=jnp.float32)
    out2 = jax.block_until_ready(
        se_block(x2, w1_t, w2_t, force_two_pass=True, max_tile_l=128))
    ref2 = se_block_ref(x2, w1_t, w2_t)
    assert out2.shape == (B, C, L2)
    assert jnp.allclose(out2, ref2, atol=1e-5, rtol=1e-5), "two-pass mismatch"

    print("KERNEL_OK")
</pallas_src>

<mosaic_0001>
module attributes {stable_mosaic.version = 11 : i64} {
  func.func @_fused_kernel(%arg0: i32, %arg1: memref<1x64x16xf32, #tpu.memory_space<vmem>>, %arg2: memref<64x4xf32, #tpu.memory_space<vmem>>, %arg3: memref<4x64xf32, #tpu.memory_space<vmem>>, %arg4: memref<1x64x16xf32, #tpu.memory_space<vmem>>) attributes {dimension_semantics = [#tpu.dimension_semantics<parallel>], iteration_bounds = array<i64: 2>, scalar_prefetch = 0 : i64, scratch_operands = 0 : i64, tpu.core_type = #tpu.core_type<tc>, window_params = [{transform_indices = @transform_0, window_bounds = array<i64: 1, 64, 16>}, {pipeline_mode = #tpu.pipeline_mode<synchronous>, transform_indices = @transform_1, window_bounds = array<i64: 64, 4>}, {pipeline_mode = #tpu.pipeline_mode<synchronous>, transform_indices = @transform_2, window_bounds = array<i64: 4, 64>}, {transform_indices = @transform_3, window_bounds = array<i64: 1, 64, 16>}]} {
    %c0 = arith.constant 0 : index
    %c0_0 = arith.constant 0 : index
    %c0_1 = arith.constant 0 : index
    %0 = vector.load %arg1[%c0, %c0_0, %c0_1] : memref<1x64x16xf32, #tpu.memory_space<vmem>>, vector<1x64x16xf32>
    %cst = arith.constant dense<0.000000e+00> : vector<1x64xf32>
    %1 = vector.multi_reduction <add>, %0, %cst [2] : vector<1x64x16xf32> to vector<1x64xf32>
    %cst_2 = arith.constant 6.250000e-02 : f32
    %2 = vector.broadcast %cst_2 : f32 to vector<1x64xf32>
    %3 = arith.mulf %1, %2 : vector<1x64xf32>
    %c0_3 = arith.constant 0 : index
    %c0_4 = arith.constant 0 : index
    %4 = vector.load %arg2[%c0_3, %c0_4] : memref<64x4xf32, #tpu.memory_space<vmem>>, vector<64x4xf32>
    %cst_5 = arith.constant dense<0.000000e+00> : vector<1x4xf32>
    %5 = tpu.matmul %3, %4, %cst_5 {dimension_numbers = #tpu.dot_dimension_numbers<[1], [0], [0], [1], [0, 0, 1, 1], [], []>} : vector<1x64xf32>, vector<64x4xf32>, vector<1x4xf32> -> vector<1x4xf32>
    %cst_6 = arith.constant 0.000000e+00 : f32
    %6 = vector.broadcast %cst_6 : f32 to vector<1x4xf32>
    %7 = arith.maximumf %5, %6 : vector<1x4xf32>
    %c0_7 = arith.constant 0 : index
    %c0_8 = arith.constant 0 : index
    %8 = vector.load %arg3[%c0_7, %c0_8] : memref<4x64xf32, #tpu.memory_space<vmem>>, vector<4x64xf32>
    %cst_9 = arith.constant dense<0.000000e+00> : vector<1x64xf32>
    %9 = tpu.matmul %7, %8, %cst_9 {dimension_numbers = #tpu.dot_dimension_numbers<[1], [0], [0], [1], [0, 0, 1, 1], [], []>} : vector<1x4xf32>, vector<4x64xf32>, vector<1x64xf32> -> vector<1x64xf32>
    %10 = arith.negf %9 : vector<1x64xf32>
    %11 = math.exp %10 : vector<1x64xf32>
    %cst_10 = arith.constant 1.000000e+00 : f32
    %12 = vector.broadcast %cst_10 : f32 to vector<1x64xf32>
    %13 = arith.addf %12, %11 : vector<1x64xf32>
    %14 = arith.divf %12, %13 : vector<1x64xf32>
    %15 = vector.shape_cast %14 : vector<1x64xf32> to vector<1x64x1xf32>
    %16 = vector.broadcast %15 : vector<1x64x1xf32> to vector<1x64x16xf32>
    %17 = arith.mulf %0, %16 : vector<1x64x16xf32>
    %c0_11 = arith.constant 0 : index
    %c0_12 = arith.constant 0 : index
    %c0_13 = arith.constant 0 : index
    %18 = vector.load %arg4[%c0_11, %c0_12, %c0_13] : memref<1x64x16xf32, #tpu.memory_space<vmem>>, vector<1x64x16xf32>
    tpu.vector_store %arg4[%c0_11, %c0_12, %c0_13], %17 {strides = array<i32>} : memref<1x64x16xf32, #tpu.memory_space<vmem>>, vector<1x64x16xf32>,
    return
  }
  func.func @transform_0(%arg0: i32) -> (i32, i32, i32) {
    %c0_i32 = arith.constant 0 : i32
    %c0_i32_0 = arith.constant 0 : i32
    %c0_i32_1 = arith.constant 0 : i32
    return %arg0, %c0_i32, %c0_i32_0 : i32, i32, i32
  }
  func.func @transform_1(%arg0: i32) -> (i32, i32) {
    %c0_i32 = arith.constant 0 : i32
    %c0_i32_0 = arith.constant 0 : i32
    %c0_i32_1 = arith.constant 0 : i32
    return %c0_i32, %c0_i32_0 : i32, i32
  }
  func.func @transform_2(%arg0: i32) -> (i32, i32) {
    %c0_i32 = arith.constant 0 : i32
    %c0_i32_0 = arith.constant 0 : i32
    %c0_i32_1 = arith.constant 0 : i32
    return %c0_i32, %c0_i32_0 : i32, i32
  }
  func.func @transform_3(%arg0: i32) -> (i32, i32, i32) {
    %c0_i32 = arith.constant 0 : i32
    %c0_i32_0 = arith.constant 0 : i32
    %c0_i32_1 = arith.constant 0 : i32
    return %arg0, %c0_i32, %c0_i32_0 : i32, i32, i32
  }
}

</mosaic_0001>

<llo_original>
// kernel: tpu_custom_call.1
$region0: #{tpu_custom_call.1}
  #allocation0 [shape = 'u32[]', space=smem, size = 0x4, offset = 0x4, fixed_abs, tag = 'smem constant byte address 0x4 - core index']
  #allocation1 [shape = 'u32[144,128]{1,0:T(1,128)}', space=vmem, size = 0x12000, scoped, tag = 'internal scratch']
  %s0 = inlined_call_operand.vmem [shape: f32[2,64,16], index: 0, kind: input, shape index: {}]
  %s1 = inlined_call_operand.vmem [shape: f32[64,4], index: 1, kind: input, shape index: {}]
  %s2 = inlined_call_operand.vmem [shape: f32[4,64], index: 2, kind: input, shape index: {}]
  %s3 = inlined_call_operand.vmem [shape: f32[2,64,16], index: 3, kind: output, shape index: {}]
  %s4 = sld [smem:[#allocation0]]
  $region45: #{tpu_custom_call.1} parent=0
    _
  %s6 = ssub.s32 1, %s4
  %s7 = scalar_select 0, %s6, %s4
  loop: start=0, step=1, limit=4
  $region2: #{tpu_custom_call.1} parent=0 // loop_pre_header
    _
  $region3: #{tpu_custom_call.1} parent=0 // loop_header
    %s9 = sphi 0, %s13
    %p10 = scmp.ge.s32.totalorder %s9, 4
    %s19 = sphi 0, %s21
    %s22 = sphi 0, %s19
    %s23 = sphi 0, %s22
    %s39 = sphi 0, %s23
    %s43 = sphi 0, %s43
    %s45 = sphi 0, %s43
    %s46 = sphi 0, %s45
    %s60 = sphi 0, %s46
    %s64 = sphi 0, %s64
    %s66 = sphi 0, %s64
    %s67 = sphi 0, %s66
    %s81 = sphi 0, %s67
    %s87 = sphi 0, %s89
    %s90 = sphi 0, %s87
    %s91 = sphi 0, %s90
    %s107 = sphi 0, %s91
  $region4: #{tpu_custom_call.1} parent=0 // loop_header_branch
    %12 = sbr.rel (%p10) target = $region8
  $region5: #{tpu_custom_call.1} parent=0 // loop_body
    %s14 = ssub.s32 %s9, 1
    %s15 = ssub.s32 %s9, 2
    %s16 = sadd.s32 %s9, 1
    %s17 = ssub.s32 %s9, %s16
    %p18 = scmp.eq.s32.totalorder %s17, 0
    %s20 = sadd.s32 %s19, 1
    %s21 = scalar_select %p18, %s19, %s20
    %p24 = pneg %p18
    %p25 = scmp.eq.s32.totalorder %s9, 1
    %p26 = por %p24, %p25
    %p27 = scmp.ne.s32.totalorder %s19, %s22
    %p28 = scmp.eq.s32.totalorder %s9, 0
    %p29 = por %p27, %p28
    %p30 = scmp.ne.s32.totalorder %s19, %s22
    %p31 = scmp.eq.s32.totalorder %s14, 1
    %p32 = por %p30, %p31
    %p33 = scmp.ne.s32.totalorder %s22, %s23
    %p34 = scmp.eq.s32.totalorder %s14, 0
    %p35 = por %p33, %p34
    %p36 = scmp.ne.s32.totalorder %s22, %s23
    %p37 = scmp.eq.s32.totalorder %s15, 1
    %p38 = por %p36, %p37
    %p40 = scmp.ne.s32.totalorder %s23, %s39
    %p41 = scmp.eq.s32.totalorder %s15, 0
    %p42 = por %p40, %p41
    %s44 = sadd.s32 %s43, 1
    %p47 = scmp.eq.s32.totalorder %s9, 1
    %p48 = scmp.ne.s32.totalorder %s43, %s45
    %p49 = scmp.eq.s32.totalorder %s9, 0
    %p50 = por %p48, %p49
    %p51 = scmp.ne.s32.totalorder %s43, %s45
    %p52 = scmp.eq.s32.totalorder %s14, 1
    %p53 = por %p51, %p52
    %p54 = scmp.ne.s32.totalorder %s45, %s46
    %p55 = scmp.eq.s32.totalorder %s14, 0
    %p56 = por %p54, %p55
    %p57 = scmp.ne.s32.totalorder %s45, %s46
    %p58 = scmp.eq.s32.totalorder %s15, 1
    %p59 = por %p57, %p58
    %p61 = scmp.ne.s32.totalorder %s46, %s60
    %p62 = scmp.eq.s32.totalorder %s15, 0
    %p63 = por %p61, %p62
    %s65 = sadd.s32 %s64, 1
    %p68 = scmp.eq.s32.totalorder %s9, 1
    %p69 = scmp.ne.s32.totalorder %s64, %s66
    %p70 = scmp.eq.s32.totalorder %s9, 0
    %p71 = por %p69, %p70
    %p72 = scmp.ne.s32.totalorder %s64, %s66
    %p73 = scmp.eq.s32.totalorder %s14, 1
    %p74 = por %p72, %p73
    %p75 = scmp.ne.s32.totalorder %s66, %s67
    %p76 = scmp.eq.s32.totalorder %s14, 0
    %p77 = por %p75, %p76
    %p78 = scmp.ne.s32.totalorder %s66, %s67
    %p79 = scmp.eq.s32.totalorder %s15, 1
    %p80 = por %p78, %p79
    %p82 = scmp.ne.s32.totalorder %s67, %s81
    %p83 = scmp.eq.s32.totalorder %s15, 0
    %p84 = por %p82, %p83
    %s85 = ssub.s32 %s9, %s16
    %p86 = scmp.eq.s32.totalorder %s85, 0
    %s88 = sadd.s32 %s87, 1
    %s89 = scalar_select %p86, %s87, %s88
    %p92 = pneg %p86
    %p93 = scmp.eq.s32.totalorder %s9, 1
    %p94 = por %p92, %p93
    %p95 = scmp.ne.s32.totalorder %s87, %s90
    %p96 = scmp.eq.s32.totalorder %s9, 0
    %p97 = por %p95, %p96
    %p98 = scmp.ne.s32.totalorder %s87, %s90
    %p99 = scmp.eq.s32.totalorder %s14, 1
    %p100 = por %p98, %p99
    %p101 = scmp.ne.s32.totalorder %s90, %s91
    %p102 = scmp.eq.s32.totalorder %s14, 0
    %p103 = por %p101, %p102
    %p104 = scmp.ne.s32.totalorder %s90, %s91
    %p105 = scmp.eq.s32.totalorder %s15, 1
    %p106 = por %p104, %p105
    %p108 = scmp.ne.s32.totalorder %s91, %s107
    %p109 = scmp.eq.s32.totalorder %s15, 0
    %p110 = por %p108, %p109
    %p111 = scmp.le.s32.totalorder 1, %s9
    %p112 = scmp.lt.s32.totalorder %s9, 3
    %p113 = pnand %p111, %p112
    %p114 = pneg %p113
    // Predicated region
    $region9: #{tpu_custom_call.1} parent=5 // pred_check
      _
    $region10: #{tpu_custom_call.1} parent=5 // pred_check_branch
      %116 = sbr.rel (%p113) target = $region12
    $region11: #{tpu_custom_call.1} parent=5 // pred_region
      %s117 = ssub.s32 %s9, 1
      // Predicated region
      $region13: #{tpu_custom_call.1} parent=11 // pred_check
        %p118 = pneg %p56
      $region14: #{tpu_custom_call.1} parent=11 // pred_check_branch
        %120 = sbr.rel (%p118) target = $region16
      $region15: #{tpu_custom_call.1} parent=11 // pred_region
        _
      $region16: #{tpu_custom_call.1} parent=11 // pred_fallthru
        _
      // Predicated region
      $region17: #{tpu_custom_call.1} parent=11 // pred_check
        %p121 = pneg %p77
      $region18: #{tpu_custom_call.1} parent=11 // pred_check_branch
        %123 = sbr.rel (%p121) target = $region20
      $region19: #{tpu_custom_call.1} parent=11 // pred_region
        _
      $region20: #{tpu_custom_call.1} parent=11 // pred_fallthru
        _
    $region12: #{tpu_custom_call.1} parent=5 // pred_fallthru
      _
    %p124 = scmp.lt.s32.totalorder %s9, 2
    // Predicated region
    $region21: #{tpu_custom_call.1} parent=5 // pred_check
      %p125 = pneg %p124
    $region22: #{tpu_custom_call.1} parent=5 // pred_check_branch
      %127 = sbr.rel (%p125) target = $region24
    $region23: #{tpu_custom_call.1} parent=5 // pred_region
      // Predicated region
      $region25: #{tpu_custom_call.1} parent=23 // pred_check
        %p128 = pneg %p29
      $region26: #{tpu_custom_call.1} parent=23 // pred_check_branch
        %130 = sbr.rel (%p128) target = $region28
      $region27: #{tpu_custom_call.1} parent=23 // pred_region
        %p131 = scmp.lt.s32.totalorder %s9, 1
        %s132 = scalar_select %p131, %s9, 1
        %s133 = smul.addr %s132, 8
        %s134 = smul.addr %s133, 8
        %s135 = scalar_lea.vmem %s0, %s134
      $region28: #{tpu_custom_call.1} parent=23 // pred_fallthru
        _
    $region24: #{tpu_custom_call.1} parent=5 // pred_fallthru
      _
    %p136 = scmp.le.s32.totalorder 1, %s9
    %p137 = scmp.lt.s32.totalorder %s9, 3
    %p138 = pnand %p136, %p137
    %p139 = pneg %p138
    // Predicated region
    $region29: #{tpu_custom_call.1} parent=5 // pred_check
      _
    $region30: #{tpu_custom_call.1} parent=5 // pred_check_branch
      %141 = sbr.rel (%p138) target = $region32
    $region31: #{tpu_custom_call.1} parent=5 // pred_region
      %s142 = ssub.s32 %s9, 1
      %p143 = scmp.lt.s32.totalorder %s14, 1
      %s144 = scalar_select %p143, %s14, 1
      %s145 = smul.addr %s144, 8
      %s146 = smul.addr %s145, 8
      %s147 = scalar_lea.vmem %s0, %s146
      %p148 = pneg %p35
      %p149 = pneg %p32
      %p150 = pneg %p56
      %p151 = pneg %p53
      %p152 = pneg %p77
      %p153 = pneg %p74
      %p154 = pneg %p103
      %p155 = pneg %p100
      %p156 = scmp.lt.s32.totalorder %s14, 1
      %s157 = scalar_select %p156, %s14, 1
      %s158 = smul.addr %s157, 8
      %s159 = smul.addr %s158, 8
      %s160 = scalar_lea.vmem %s3, %s159
      %p161 = scmp.lt.s32.totalorder %s14, 1
      %s162 = scalar_select %p161, %s14, 1
      %s163 = smul.addr %s162, 8
      %s164 = smul.addr %s163, 8
      %s165 = scalar_lea.vmem %s0, %s164
      %p166 = scmp.lt.s32.totalorder %s14, 1
      %s167 = scalar_select %p166, %s14, 1
      %s168 = smul.addr %s167, 8
      %s169 = smul.addr %s168, 8
      %s170 = scalar_lea.vmem %s3, %s169
      %v171 = vld [vmem:[%s165] sm:$0xff]
      %v172 = vld [vmem:[%s165 + $0x8] sm:$0xff]
      %v173 = vld [vmem:[%s165 + $0x10] sm:$0xff]
      %v174 = vld [vmem:[%s165 + $0x18] sm:$0xff]
      %v175 = vld [vmem:[%s165 + $0x20] sm:$0xff]
      %v176 = vld [vmem:[%s165 + $0x28] sm:$0xff]
      %v177 = vld [vmem:[%s165 + $0x30] sm:$0xff]
      %v178 = vld [vmem:[%s165 + $0x38] sm:$0xff]
      %vm179 = vcmask 130048
      %v180 = vsel %vm179, %v171, 0.0
      %181 = vadd.xlane.f32.xlu0 %v180
      %v182 = vpop.xlane.xlu0 %181
      %v183 = vsel %vm179, %v172, 0.0
      %184 = vadd.xlane.f32.xlu0 %v183
      %v185 = vpop.xlane.xlu0 %184
      %v186 = vsel %vm179, %v173, 0.0
      %187 = vadd.xlane.f32.xlu0 %v186
      %v188 = vpop.xlane.xlu0 %187
      %v189 = vsel %vm179, %v174, 0.0
      %190 = vadd.xlane.f32.xlu0 %v189
      %v191 = vpop.xlane.xlu0 %190
      %v192 = vsel %vm179, %v175, 0.0
      %193 = vadd.xlane.f32.xlu0 %v192
      %v194 = vpop.xlane.xlu0 %193
      %v195 = vsel %vm179, %v176, 0.0
      %196 = vadd.xlane.f32.xlu0 %v195
      %v197 = vpop.xlane.xlu0 %196
      %v198 = vsel %vm179, %v177, 0.0
      %199 = vadd.xlane.f32.xlu0 %v198
      %v200 = vpop.xlane.xlu0 %199
      %v201 = vsel %vm179, %v178, 0.0
      %202 = vadd.xlane.f32.xlu0 %v201
      %v203 = vpop.xlane.xlu0 %202
      %v204 = vmul.f32 %v182, 0.0625
      %v205 = vmul.f32 %v185, 0.0625
      %v206 = vmul.f32 %v188, 0.0625
      %v207 = vmul.f32 %v191, 0.0625
      %v208 = vmul.f32 %v194, 0.0625
      %v209 = vmul.f32 %v197, 0.0625
      %v210 = vmul.f32 %v200, 0.0625
      %v211 = vmul.f32 %v203, 0.0625
      %v212 = vld [vmem:[%s1] sm:$0xff]
      %v213 = vld [vmem:[%s1 + $0x8] sm:$0xff]
      %v214 = vld [vmem:[%s1 + $0x10] sm:$0xff]
      %v215 = vld [vmem:[%s1 + $0x18] sm:$0xff]
      %v216 = vld [vmem:[%s1 + $0x20] sm:$0xff]
      %v217 = vld [vmem:[%s1 + $0x28] sm:$0xff]
      %v218 = vld [vmem:[%s1 + $0x30] sm:$0xff]
      %v219 = vld [vmem:[%s1 + $0x38] sm:$0xff]
      %v228 = vlaneseq
      %v229 = vand.u32 %v228, 127
      %v230 = vlaneseq
      %v231 = vshrl.u32 %v230, 7
      %v232 = vsub.s32 %v229, %v231
      %v233 = vrot.slane %v204, %v232
      %v234 = vadd.s32 %v229, 4294967288
      %v235 = vlaneseq
      %v236 = vshrl.u32 %v235, 7
      %v237 = vsub.s32 %v234, %v236
      %v238 = vrot.slane %v205, %v237
      %vm239 = vcmask 130112
      %v240 = vsel %vm239, %v238, %v233
      %v241 = vadd.s32 %v229, 4294967280
      %v242 = vlaneseq
      %v243 = vshrl.u32 %v242, 7
      %v244 = vsub.s32 %v241, %v243
      %v245 = vrot.slane %v206, %v244
      %vm246 = vcmask 195712
      %v247 = vsel %vm246, %v245, %v240
      %v248 = vadd.s32 %v229, 4294967272
      %v249 = vlaneseq
      %v250 = vshrl.u32 %v249, 7
      %v251 = vsub.s32 %v248, %v250
      %v252 = vrot.slane %v207, %v251
      %vm253 = vcmask 261312
      %v254 = vsel %vm253, %v252, %v247
      %v255 = vadd.s32 %v229, 4294967264
      %v256 = vlaneseq
      %v257 = vshrl.u32 %v256, 7
      %v258 = vsub.s32 %v255, %v257
      %v259 = vrot.slane %v208, %v258
      %vm260 = vcmask 326912
      %v261 = vsel %vm260, %v259, %v254
      %v262 = vadd.s32 %v229, 4294967256
      %v263 = vlaneseq
      %v264 = vshrl.u32 %v263, 7
      %v265 = vsub.s32 %v262, %v264
      %v266 = vrot.slane %v209, %v265
      %vm267 = vcmask 392512
      %v268 = vsel %vm267, %v266, %v261
      %v269 = vadd.s32 %v229, 4294967248
      %v270 = vlaneseq
      %v271 = vshrl.u32 %v270, 7
      %v272 = vsub.s32 %v269, %v271
      %v273 = vrot.slane %v210, %v272
      %vm274 = vcmask 458112
      %v275 = vsel %vm274, %v273, %v268
      %v276 = vadd.s32 %v229, 4294967240
      %v277 = vlaneseq
      %v278 = vshrl.u32 %v277, 7
      %v279 = vsub.s32 %v276, %v278
      %v280 = vrot.slane %v211, %v279
      %vm281 = vcmask 523712
      %v282 = vsel %vm281, %v280, %v275
      %vm283 = vcmask 523264
      %v284 = vsel %vm283, %v282, 0
      %286 = vmatprep.subr.mxu0 0.0
      %287 = vmatpush1.msra.mxu0 %v212
      %288 = vmatprep.subr.mxu0 0.0
      %289 = vmatpush1.msra.mxu0 %v213
      %290 = vmatprep.subr.mxu0 0.0
      %291 = vmatpush1.msra.mxu0 %v214
      %292 = vmatprep.subr.mxu0 0.0
      %293 = vmatpush1.msra.mxu0 %v215
      %294 = vmatprep.subr.mxu0 0.0
      %295 = vmatpush1.msra.mxu0 %v216
      %296 = vmatprep.subr.mxu0 0.0
      %297 = vmatpush1.msra.mxu0 %v217
      %298 = vmatprep.subr.mxu0 0.0
      %299 = vmatpush1.msra.mxu0 %v218
      %300 = vmatprep.subr.mxu0 0.0
      %301 = vmatpush1.msra.mxu0 %v219
      %302 = vmatprep.subr.mxu0 0.0
      %303 = vmatpush1.msra.mxu0 0.0
      %304 = vmatprep.subr.mxu0 0.0
      %305 = vmatpush1.msra.mxu0 0.0
      %306 = vmatprep.subr.mxu0 0.0
      %307 = vmatpush1.msra.mxu0 0.0
      %308 = vmatprep.subr.mxu0 0.0
      %309 = vmatpush1.msra.mxu0 0.0
      %310 = vmatprep.subr.mxu0 0.0
      %311 = vmatpush1.msra.mxu0 0.0
      %312 = vmatprep.subr.mxu0 0.0
      %313 = vmatpush1.msra.mxu0 0.0
      %314 = vmatprep.subr.mxu0 0.0
      %315 = vmatpush1.msra.mxu0 0.0
      %316 = vmatprep.subr.mxu0 0.0
      %317 = vmatpush1.msra.mxu0 0.0
      %318 = vmatprep.subr.mxu0 0.0
      %319 = vmatpush1.msra.mxu0 0.0
      %320 = vmatprep.subr.mxu0 0.0
      %321 = vmatpush1.msra.mxu0 0.0
      %322 = vmatprep.subr.mxu0 0.0
      %323 = vmatpush1.msra.mxu0 0.0
      %324 = vmatprep.subr.mxu0 0.0
      %325 = vmatpush1.msra.mxu0 0.0
      %326 = vmatprep.subr.mxu0 0.0
      %327 = vmatpush1.msra.mxu0 0.0
      %328 = vmatprep.subr.mxu0 0.0
      %329 = vmatpush1.msra.mxu0 0.0
      %330 = vmatprep.subr.mxu0 0.0
      %331 = vmatpush1.msra.mxu0 0.0
      %332 = vmatprep.subr.mxu0 0.0
      %333 = vmatpush1.msra.mxu0 0.0
      %334 = vmatprep.subr.mxu0 0.0
      %335 = vmatpush1.msra.mxu0 0.0
      %336 = vmatprep.subr.mxu0 0.0
      %337 = vmatpush1.msra.mxu0 0.0
      %338 = vmatprep.subr.mxu0 0.0
      %339 = vmatpush1.msra.mxu0 0.0
      %340 = vmatprep.subr.mxu0 0.0
      %341 = vmatpush1.msra.mxu0 0.0
      %342 = vmatprep.subr.mxu0 0.0
      %343 = vmatpush1.msra.mxu0 0.0
      %344 = vmatprep.subr.mxu0 0.0
      %345 = vmatpush1.msra.mxu0 0.0
      %346 = vmatprep.subr.mxu0 0.0
      %347 = vmatpush1.msra.mxu0 0.0
      %348 = vmatprep.subr.mxu0 0.0
      %349 = vmatpush1.msra.mxu0 0.0
      %350 = vmatprep.mubr.f32.mxu0 0.0
      %351 = vmatmul.mubr.f32.gmra.mrb[0].mxu0 %v284
      %v352 = vpop.f32.mrb[0].mxu0
      %v353 = vadd.f32 0.0, %v352
      %v354 = vpop.f32.mrb[0].mxu0
      %355 = vdwg.mxu0
      %v356 = vmax.f32 %v353, 0.0
      %v357 = vld [vmem:[%s2] sm:$0xf]
      %vm358 = vcmask 31744
      %v360 = vsel %vm358, %v356, 0
      %vm362 = vcmask 1043456
      %v364 = vsel %vm362, %v357, 0
      %366 = vmatprep.subr.mxu0 0.0
      %367 = vmatpush1.msra.mxu0 %v364
      %368 = vmatprep.subr.mxu0 0.0
      %369 = vmatpush1.msra.mxu0 0.0
      %370 = vmatprep.subr.mxu0 0.0
      %371 = vmatpush1.msra.mxu0 0.0
      %372 = vmatprep.subr.mxu0 0.0
      %373 = vmatpush1.msra.mxu0 0.0
      %374 = vmatprep.subr.mxu0 0.0
      %375 = vmatpush1.msra.mxu0 0.0
      %376 = vmatprep.subr.mxu0 0.0
      %377 = vmatpush1.msra.mxu0 0.0
      %378 = vmatprep.subr.mxu0 0.0
      %379 = vmatpush1.msra.mxu0 0.0
      %380 = vmatprep.subr.mxu0 0.0
      %381 = vmatpush1.msra.mxu0 0.0
      %382 = vmatprep.subr.mxu0 0.0
      %383 = vmatpush1.msra.mxu0 0.0
      %384 = vmatprep.subr.mxu0 0.0
      %385 = vmatpush1.msra.mxu0 0.0
      %386 = vmatprep.subr.mxu0 0.0
      %387 = vmatpush1.msra.mxu0 0.0
      %388 = vmatprep.subr.mxu0 0.0
      %389 = vmatpush1.msra.mxu0 0.0
      %390 = vmatprep.subr.mxu0 0.0
      %391 = vmatpush1.msra.mxu0 0.0
      %392 = vmatprep.subr.mxu0 0.0
      %393 = vmatpush1.msra.mxu0 0.0
      %394 = vmatprep.subr.mxu0 0.0
      %395 = vmatpush1.msra.mxu0 0.0
      %396 = vmatprep.subr.mxu0 0.0
      %397 = vmatpush1.msra.mxu0 0.0
      %398 = vmatprep.subr.mxu0 0.0
      %399 = vmatpush1.msra.mxu0 0.0
      %400 = vmatprep.subr.mxu0 0.0
      %401 = vmatpush1.msra.mxu0 0.0
      %402 = vmatprep.subr.mxu0 0.0
      %403 = vmatpush1.msra.mxu0 0.0
      %404 = vmatprep.subr.mxu0 0.0
      %405 = vmatpush1.msra.mxu0 0.0
      %406 = vmatprep.subr.mxu0 0.0
      %407 = vmatpush1.msra.mxu0 0.0
      %408 = vmatprep.subr.mxu0 0.0
      %409 = vmatpush1.msra.mxu0 0.0
      %410 = vmatprep.subr.mxu0 0.0
      %411 = vmatpush1.msra.mxu0 0.0
      %412 = vmatprep.subr.mxu0 0.0
      %413 = vmatpush1.msra.mxu0 0.0
      %414 = vmatprep.subr.mxu0 0.0
      %415 = vmatpush1.msra.mxu0 0.0
      %416 = vmatprep.subr.mxu0 0.0
      %417 = vmatpush1.msra.mxu0 0.0
      %418 = vmatprep.subr.mxu0 0.0
      %419 = vmatpush1.msra.mxu0 0.0
      %420 = vmatprep.subr.mxu0 0.0
      %421 = vmatpush1.msra.mxu0 0.0
      %422 = vmatprep.subr.mxu0 0.0
      %423 = vmatpush1.msra.mxu0 0.0
      %424 = vmatprep.subr.mxu0 0.0
      %425 = vmatpush1.msra.mxu0 0.0
      %426 = vmatprep.subr.mxu0 0.0
      %427 = vmatpush1.msra.mxu0 0.0
      %428 = vmatprep.subr.mxu0 0.0
      %429 = vmatpush1.msra.mxu0 0.0
      %430 = vmatprep.mubr.f32.mxu0 0.0
      %431 = vmatmul.mubr.f32.gmra.mrb[0].mxu0 %v360
      %v432 = vpop.f32.mrb[0].mxu0
      %v433 = vadd.f32 0.0, %v432
      %v434 = vpop.f32.mrb[0].mxu0
      %435 = vdwg.mxu0
      %v436 = vxor.u32 %v433, 2147483648
      %v437 = vmul.f32 %v436, 1.442695
      %v438 = vpow.pop %v437
      %v439 = vadd.f32 %v438, 1.0
      %v440 = vrcp.pop %v439
      %v441 = vmul.f32 1.0, %v440
      %v442 = vlaneseq
      %v443 = vshrl.u32 %v442, 7
      %v444 = vsub.s32 0, %v443
      %v445 = vrot.slane %v441, %v444
      %447 = vbcast.lane.b32.xlu0 %v445, 256
      %v448 = vpop.permute.xlu0 %447
      %s450 = sor.u32 256, 8
      %451 = vbcast.lane.b32.xlu0 %v445, %s450
      %v452 = vpop.permute.xlu0 %451
      %s454 = sor.u32 256, 16
      %455 = vbcast.lane.b32.xlu0 %v445, %s454
      %v456 = vpop.permute.xlu0 %455
      %s458 = sor.u32 256, 24
      %459 = vbcast.lane.b32.xlu0 %v445, %s458
      %v460 = vpop.permute.xlu0 %459
      %s462 = sor.u32 256, 32
      %463 = vbcast.lane.b32.xlu0 %v445, %s462
      %v464 = vpop.permute.xlu0 %463
      %s466 = sor.u32 256, 40
      %467 = vbcast.lane.b32.xlu0 %v445, %s466
      %v468 = vpop.permute.xlu0 %467
      %s470 = sor.u32 256, 48
      %471 = vbcast.lane.b32.xlu0 %v445, %s470
      %v472 = vpop.permute.xlu0 %471
      %s474 = sor.u32 256, 56
      %475 = vbcast.lane.b32.xlu0 %v445, %s474
      %v476 = vpop.permute.xlu0 %475
      %v477 = vmul.f32 %v171, %v448
      %v478 = vmul.f32 %v172, %v452
      %v479 = vmul.f32 %v173, %v456
      %v480 = vmul.f32 %v174, %v460
      %v481 = vmul.f32 %v175, %v464
      %v482 = vmul.f32 %v176, %v468
      %v483 = vmul.f32 %v177, %v472
      %v484 = vmul.f32 %v178, %v476
      %485 = vst.msk [vmem:[%s170] sm:$0xff] %vm179, %v477
      %486 = vst.msk [vmem:[%s170 + $0x8] sm:$0xff] %vm179, %v478
      %487 = vst.msk [vmem:[%s170 + $0x10] sm:$0xff] %vm179, %v479
      %488 = vst.msk [vmem:[%s170 + $0x18] sm:$0xff] %vm179, %v480
      %489 = vst.msk [vmem:[%s170 + $0x20] sm:$0xff] %vm179, %v481
      %490 = vst.msk [vmem:[%s170 + $0x28] sm:$0xff] %vm179, %v482
      %491 = vst.msk [vmem:[%s170 + $0x30] sm:$0xff] %vm179, %v483
      %492 = vst.msk [vmem:[%s170 + $0x38] sm:$0xff] %vm179, %v484
      %p493 = scmp.lt.s32.totalorder %s14, 1
      %s494 = scalar_select %p493, %s14, 1
      %s495 = smul.addr %s494, 8
      %s496 = smul.addr %s495, 8
      %s497 = scalar_lea.vmem %s3, %s496
      // Predicated region
      $region33: #{tpu_custom_call.1} parent=31 // pred_check
        %p498 = pneg %p100
      $region34: #{tpu_custom_call.1} parent=31 // pred_check_branch
        %500 = sbr.rel (%p498) target = $region36
      $region35: #{tpu_custom_call.1} parent=31 // pred_region
        _
      $region36: #{tpu_custom_call.1} parent=31 // pred_fallthru
        _
    $region32: #{tpu_custom_call.1} parent=5 // pred_fallthru
      _
    %p501 = scmp.le.s32.totalorder 2, %s9
    // Predicated region
    $region37: #{tpu_custom_call.1} parent=5 // pred_check
      %p502 = pneg %p501
    $region38: #{tpu_custom_call.1} parent=5 // pred_check_branch
      %504 = sbr.rel (%p502) target = $region40
    $region39: #{tpu_custom_call.1} parent=5 // pred_region
      %s505 = ssub.s32 %s9, 2
      // Predicated region
      $region41: #{tpu_custom_call.1} parent=39 // pred_check
        %p506 = pneg %p106
      $region42: #{tpu_custom_call.1} parent=39 // pred_check_branch
        %508 = sbr.rel (%p506) target = $region44
      $region43: #{tpu_custom_call.1} parent=39 // pred_region
        %p509 = scmp.lt.s32.totalorder %s15, 1
        %s510 = scalar_select %p509, %s15, 1
        %s511 = smul.addr %s510, 8
        %s512 = smul.addr %s511, 8
        %s513 = scalar_lea.vmem %s3, %s512
      $region44: #{tpu_custom_call.1} parent=39 // pred_fallthru
        _
    $region40: #{tpu_custom_call.1} parent=5 // pred_fallthru
      _
  $region6: #{tpu_custom_call.1} parent=0 // loop_footer
    %s13 = sadd.s32 1, %s9
  $region7: #{tpu_custom_call.1} parent=0 // loop_footer_branch
    %8 = sbr.rel target = $region3
  $region8: #{tpu_custom_call.1} parent=0 // loop_exit
    _

</llo_original>
